<compile_context>
chip_gen: v5e
topology: v5e:2x2
jax: 0.10.0
libtpu: 0.0.40
codegen_flags: <defaults>
</compile_context>

<pallas_src>
import jax
import jax.numpy as jnp
from jax.experimental import pallas as pl
from jax.experimental.pallas import tpu as pltpu


_LANE = 128
_PHYSICAL_VMEM_FALLBACK = 64 * 1024 * 1024  # v7x-sized; safe lower bound


def _physical_vmem_bytes() -> int:
    try:
        return int(pltpu.get_tpu_info().vmem_capacity_bytes)
    except Exception:
        return _PHYSICAL_VMEM_FALLBACK


def _sublane_align(itemsize: int) -> int:
    if itemsize >= 4:
        return 8
    if itemsize == 2:
        return 16
    return 32  # int8 / fp8 pack 32 rows per sublane group


def _round_up(x: int, m: int) -> int:
    return ((x + m - 1) // m) * m


# ----------------------------------------------------------------------------
# Kernels
# ----------------------------------------------------------------------------

def _plain_kernel(x_ref, o_ref):
    """One (tm, D) tile: rows independent, reduce sum-of-squares over lanes."""
    xf = x_ref[...].astype(jnp.float32)
    sumsq = jnp.sum(xf * xf, axis=-1, keepdims=True)  # (tm, 1), f32
    inv = jax.lax.rsqrt(sumsq)                         # EUP rsqrt (free slot)
    # Scale in f32 and cast once: full-precision scale factor, single cast.
    o_ref[...] = (xf * inv).astype(o_ref.dtype)


def _make_packed_kernel(k: int, d: int):
    """Kernel for a (tm, k*d) tile where each packed row holds k logical rows
    of width d.  Segmented (per-group) reduction over the lane axis keeps the
    DMA and stores lane-dense."""

    def kernel(x_ref, o_ref):
        xf = x_ref[...].astype(jnp.float32)            # (tm, k*d)
        cols = []
        for g in range(k):                              # small static unroll
            xg = xf[:, g * d:(g + 1) * d]                # (tm, d) static slice
            s = jnp.sum(xg * xg, axis=-1, keepdims=True) # (tm, 1), exact f32
            cols.append(xg * jax.lax.rsqrt(s))
        y = jnp.concatenate(cols, axis=-1)               # (tm, k*d)
        o_ref[...] = y.astype(o_ref.dtype)

    return kernel


# ----------------------------------------------------------------------------
# Launcher
# ----------------------------------------------------------------------------

def _launch(xp, kernel, flops, transcendentals, bytes_accessed):
    Bp, Dp = xp.shape
    itemsize = jnp.dtype(xp.dtype).itemsize
    align = _sublane_align(itemsize)

    physical = _physical_vmem_bytes()
    # Scoped limit: half of physical VMEM, capped at 64 MiB
    # (=> 64 MiB on v5e/v6e's 128 MiB, 32 MiB on v7x's 64 MiB).
    vmem_limit = min(physical // 2, 64 * 1024 * 1024)
    # ~3/4 of the scoped limit for the pipelined tiles; rest is compiler headroom.
    tile_budget = (vmem_limit * 3) // 4

    # Conservative VMEM bytes per tile row:
    #   input + output blocks, each double-buffered (4 * itemsize per element),
    #   plus ~4 full-width f32 temporaries the elementwise chain may materialize.
    bytes_per_row = Dp * (4 * itemsize + 16)

    # Guard very wide rows: raise the scoped limit if even an `align`-row tile
    # does not fit; beyond physical VMEM, fail with a clear error.
    min_tile_bytes = bytes_per_row * align
    if min_tile_bytes > tile_budget:
        vmem_limit = min(max(physical - (8 << 20), 1 << 20),
                         (min_tile_bytes * 4) // 3 + (1 << 20))
        tile_budget = (vmem_limit * 3) // 4
        if min_tile_bytes > tile_budget:
            # TODO(synk): chunked-D two-pass variant (per-row sumsq scratch +
            # finalize) for extremely wide feature dims.
            raise ValueError(
                f"feature dim {Dp} too wide for single-pass VMEM tiling")

    b_rounded = _round_up(Bp, align)
    # Budget-driven row tile (no artificial cap).
    tm_budget = tile_budget // bytes_per_row
    # Keep >= 4 grid steps when the batch allows so v7x's two TensorCores both
    # get work under dimension_semantics=("parallel",).
    tm_parallel = _round_up(pl.cdiv(b_rounded, 4), align)
    tm = max(align, min(tm_budget, tm_parallel, b_rounded))
    tm = (tm // align) * align

    grid = (pl.cdiv(Bp, tm),)

    return pl.pallas_call(
        kernel,
        out_shape=jax.ShapeDtypeStruct((Bp, Dp), xp.dtype),
        grid_spec=pltpu.PrefetchScalarGridSpec(
            num_scalar_prefetch=0,
            grid=grid,
            in_specs=[pl.BlockSpec((tm, Dp), lambda i: (i, 0))],
            out_specs=pl.BlockSpec((tm, Dp), lambda i: (i, 0)),
        ),
        compiler_params=pltpu.CompilerParams(
            dimension_semantics=("parallel",),
            vmem_limit_bytes=vmem_limit,
        ),
        cost_estimate=pl.CostEstimate(
            flops=flops,
            transcendentals=transcendentals,
            bytes_accessed=bytes_accessed,
        ),
    )(xp)


def l2_normalization(x: jax.Array) -> jax.Array:
    """Row-wise L2 normalization: x / ||x||_2 along axis=1.  x: (B, D)."""
    B, D = x.shape
    itemsize = jnp.dtype(x.dtype).itemsize
    flops = 3 * B * D          # square, accumulate, scale
    transcendentals = B        # one rsqrt per row
    bytes_accessed = 2 * B * D * itemsize

    # Lane-dense packing for small feature dims: fold k = 128 // D logical rows
    # into one 128-lane row so stores and the HBM<->VMEM DMA are full width.
    k = _LANE // D if (D < _LANE and _LANE % D == 0) else 1
    if k > 1 and k <= 32 and B % k == 0:
        xp = x.reshape(B // k, k * D)
        out = _launch(xp, _make_packed_kernel(k, D),
                      flops, transcendentals, bytes_accessed)
        return out.reshape(B, D)

    # TODO(synk): D < 128 that does not divide 128 (or B % k != 0) still hits
    # the lane-masked store path; a padded/packed variant could cover it too.
    return _launch(x, _plain_kernel, flops, transcendentals, bytes_accessed)


if __name__ == "__main__":
    key = jax.random.PRNGKey(0)

    def ref_norm(a):
        af = a.astype(jnp.float32)
        return (af / jnp.linalg.norm(af, axis=1, keepdims=True)).astype(a.dtype)

    # 1) Small-D metric-learning shape -> exercises the lane-dense packed path
    #    (D=32 divides 128, k=4, packed rows are 128 lanes wide).
    B1, D1 = 32, 32
    x1 = jax.random.normal(key, (B1, D1), dtype=jnp.float32)
    o1 = jax.block_until_ready(l2_normalization(x1))
    assert o1.shape == x1.shape and o1.dtype == x1.dtype
    assert jnp.allclose(o1, ref_norm(x1), atol=1e-5, rtol=1e-5)

    # 2) Lane-aligned D=128 -> plain path, multi-step grid.
    B2, D2 = 256, 128
    x2 = jax.random.normal(jax.random.PRNGKey(1), (B2, D2), dtype=jnp.float32)
    o2 = jax.block_until_ready(l2_normalization(x2))
    assert jnp.allclose(o2, ref_norm(x2), atol=1e-5, rtol=1e-5)

    # 3) D that does not divide 128 -> fallback (masked-store) path.
    B3, D3 = 16, 48
    x3 = jax.random.normal(jax.random.PRNGKey(2), (B3, D3), dtype=jnp.float32)
    o3 = jax.block_until_ready(l2_normalization(x3))
    assert jnp.allclose(o3, ref_norm(x3), atol=1e-5, rtol=1e-5)

    # 4) bf16 input -> packed path (k=2); scale computed in f32, cast once.
    B4, D4 = 32, 64
    x4 = jax.random.normal(jax.random.PRNGKey(3), (B4, D4), dtype=jnp.bfloat16)
    o4 = jax.block_until_ready(l2_normalization(x4))
    assert o4.dtype == jnp.bfloat16
    assert jnp.allclose(o4.astype(jnp.float32), ref_norm(x4).astype(jnp.float32),
                        atol=1e-2, rtol=1e-2)

    print("KERNEL_OK")
</pallas_src>

<mosaic_0001>
module attributes {stable_mosaic.version = 11 : i64} {
  func.func @kernel(%arg0: i32, %arg1: memref<8x128xf32, #tpu.memory_space<vmem>>, %arg2: memref<8x128xf32, #tpu.memory_space<vmem>>) attributes {dimension_semantics = [#tpu.dimension_semantics<parallel>], iteration_bounds = array<i64: 1>, scalar_prefetch = 0 : i64, scratch_operands = 0 : i64, tpu.core_type = #tpu.core_type<tc>, window_params = [{transform_indices = @transform_0, window_bounds = array<i64: 8, 128>}, {transform_indices = @transform_1, window_bounds = array<i64: 8, 128>}]} {
    %c0 = arith.constant 0 : index
    %c0_0 = arith.constant 0 : index
    %0 = vector.load %arg1[%c0, %c0_0] : memref<8x128xf32, #tpu.memory_space<vmem>>, vector<8x128xf32>
    %1 = vector.extract_strided_slice %0 {offsets = [0, 0], sizes = [8, 32], strides = [1, 1]} : vector<8x128xf32> to vector<8x32xf32>
    %2 = arith.mulf %1, %1 : vector<8x32xf32>
    %cst = arith.constant dense<0.000000e+00> : vector<8xf32>
    %3 = vector.multi_reduction <add>, %2, %cst [1] : vector<8x32xf32> to vector<8xf32>
    %4 = vector.shape_cast %3 : vector<8xf32> to vector<8x1xf32>
    %5 = math.rsqrt %4 : vector<8x1xf32>
    %6 = vector.broadcast %5 : vector<8x1xf32> to vector<8x32xf32>
    %7 = arith.mulf %1, %6 : vector<8x32xf32>
    %8 = vector.extract_strided_slice %0 {offsets = [0, 32], sizes = [8, 32], strides = [1, 1]} : vector<8x128xf32> to vector<8x32xf32>
    %9 = arith.mulf %8, %8 : vector<8x32xf32>
    %cst_1 = arith.constant dense<0.000000e+00> : vector<8xf32>
    %10 = vector.multi_reduction <add>, %9, %cst_1 [1] : vector<8x32xf32> to vector<8xf32>
    %11 = vector.shape_cast %10 : vector<8xf32> to vector<8x1xf32>
    %12 = math.rsqrt %11 : vector<8x1xf32>
    %13 = vector.broadcast %12 : vector<8x1xf32> to vector<8x32xf32>
    %14 = arith.mulf %8, %13 : vector<8x32xf32>
    %15 = vector.extract_strided_slice %0 {offsets = [0, 64], sizes = [8, 32], strides = [1, 1]} : vector<8x128xf32> to vector<8x32xf32>
    %16 = arith.mulf %15, %15 : vector<8x32xf32>
    %cst_2 = arith.constant dense<0.000000e+00> : vector<8xf32>
    %17 = vector.multi_reduction <add>, %16, %cst_2 [1] : vector<8x32xf32> to vector<8xf32>
    %18 = vector.shape_cast %17 : vector<8xf32> to vector<8x1xf32>
    %19 = math.rsqrt %18 : vector<8x1xf32>
    %20 = vector.broadcast %19 : vector<8x1xf32> to vector<8x32xf32>
    %21 = arith.mulf %15, %20 : vector<8x32xf32>
    %22 = vector.extract_strided_slice %0 {offsets = [0, 96], sizes = [8, 32], strides = [1, 1]} : vector<8x128xf32> to vector<8x32xf32>
    %23 = arith.mulf %22, %22 : vector<8x32xf32>
    %cst_3 = arith.constant dense<0.000000e+00> : vector<8xf32>
    %24 = vector.multi_reduction <add>, %23, %cst_3 [1] : vector<8x32xf32> to vector<8xf32>
    %25 = vector.shape_cast %24 : vector<8xf32> to vector<8x1xf32>
    %26 = math.rsqrt %25 : vector<8x1xf32>
    %27 = vector.broadcast %26 : vector<8x1xf32> to vector<8x32xf32>
    %28 = arith.mulf %22, %27 : vector<8x32xf32>
    %29 = tpu.concatenate %7, %14, %21, %28 in 1 : vector<8x32xf32>, vector<8x32xf32>, vector<8x32xf32>, vector<8x32xf32> -> vector<8x128xf32>
    %c0_4 = arith.constant 0 : index
    %c0_5 = arith.constant 0 : index
    %30 = vector.load %arg2[%c0_4, %c0_5] : memref<8x128xf32, #tpu.memory_space<vmem>>, vector<8x128xf32>
    tpu.vector_store %arg2[%c0_4, %c0_5], %29 {strides = array<i32>} : memref<8x128xf32, #tpu.memory_space<vmem>>, vector<8x128xf32>,
    return
  }
  func.func @transform_0(%arg0: i32) -> (i32, i32) {
    %c0_i32 = arith.constant 0 : i32
    %c0_i32_0 = arith.constant 0 : i32
    return %arg0, %c0_i32 : i32, i32
  }
  func.func @transform_1(%arg0: i32) -> (i32, i32) {
    %c0_i32 = arith.constant 0 : i32
    %c0_i32_0 = arith.constant 0 : i32
    return %arg0, %c0_i32 : i32, i32
  }
}

</mosaic_0001>

<llo_original>
// kernel: tpu_custom_call.1
$region0: #{tpu_custom_call.1}
  #allocation0 [shape = 'u32[]', space=smem, size = 0x4, offset = 0x4, fixed_abs, tag = 'smem constant byte address 0x4 - core index']
  #allocation1 [shape = 'u32[72,128]{1,0:T(1,128)}', space=vmem, size = 0x9000, scoped, tag = 'internal scratch']
  %s0 = inlined_call_operand.hbm [shape: f32[8,128], index: 0, kind: input, shape index: {}]
  %s1 = inlined_call_operand.hbm [shape: f32[8,128], index: 1, kind: output, shape index: {}]
  %s2 = sld [smem:[#allocation0]]
  $region18: #{tpu_custom_call.1} parent=0
    _
  %s4 = ssub.s32 1, %s2
  %s5 = scalar_select 0, %s4, %s2
  $region1: #{tpu_custom_call.1} parent=0
    #allocation2 [shape = 'u8[4096]{0}', space=vmem, size = 0x1000, scoped, tag = 'input window, operand 0, single buffered']
    #allocation3 [shape = 's32[1]{0}', space=sflag, size = 0x4, scoped, tag = 'scoped memory for tpu_custom_call.1']
    #allocation4 [shape = 's32[1]{0}', space=sflag, size = 0x4, scoped, tag = 'scoped memory for tpu_custom_call.1']
    #allocation5 [shape = 'u8[4096]{0}', space=vmem, size = 0x1000, scoped, tag = 'output window, operand 0, single buffered']
    %6 = vsyncpa [#allocation3], 0
    %7 = vsyncpa [#allocation4], 0
    // Predicated region
    $region2: #{tpu_custom_call.1} parent=1 // pred_check
      _
    $region3: #{tpu_custom_call.1} parent=1 // pred_check_branch
      %9 = sbr.rel (0) target = $region5
    $region4: #{tpu_custom_call.1} parent=1 // pred_region
      %11 = vsyncadd [#allocation3], 0
      %s13 = sshll.u32 %s0, 4
      %s14 = int_to_ptr.hbm [resolvable:$true] %s13
      %s15 = sshll.u32 [#allocation2], 4
      %s16 = int_to_ptr.vmem [resolvable:$true] %s15
      %18 = dma.hbm_to_vmem [thread:$0]  %s14, 128, %s16, [#allocation3]
    $region5: #{tpu_custom_call.1} parent=1 // pred_fallthru
      _
    // Predicated region
    $region6: #{tpu_custom_call.1} parent=1 // pred_check
      _
    $region7: #{tpu_custom_call.1} parent=1 // pred_check_branch
      %20 = sbr.rel (0) target = $region9
    $region8: #{tpu_custom_call.1} parent=1 // pred_region
      %22 = dma.done [#allocation3], 128
    $region9: #{tpu_custom_call.1} parent=1 // pred_fallthru
      _
    %v23 = vld [vmem:[#allocation2] sm:$0xff]
    %v24 = vmul.f32 %v23, %v23
    %vm25 = vcmask 261120
    %v26 = vsel %vm25, %v24, 0.0
    %27 = vadd.xlane.f32.xlu0 %v26
    %v28 = vpop.xlane.xlu0 %27
    %v29 = vrsqrt.pop %v28
    %v30 = vmul.f32 %v29, %v28
    %v31 = vmul.f32 %v30, %v29
    %v32 = vmul.f32 0.5, %v31
    %v33 = vsub.f32 1.5, %v32
    %v34 = vmul.f32 %v29, %v33
    %vm35 = vweird.f32 %v28
    %vm36 = vweird.f32 %v29
    %vm37 = vmor %vm35, %vm36
    %v38 = vsel %vm37, %v29, %v34
    %v39 = vmul.f32 %v23, %v38
    %41 = vrot.lane.b32.xlu0 %v24, 96
    %v42 = vpop.permute.xlu0 %41
    %v44 = vsel %vm25, %v42, 0.0
    %45 = vadd.xlane.f32.xlu0 %v44
    %v46 = vpop.xlane.xlu0 %45
    %v47 = vrsqrt.pop %v46
    %v48 = vmul.f32 %v47, %v46
    %v49 = vmul.f32 %v48, %v47
    %v50 = vmul.f32 0.5, %v49
    %v51 = vsub.f32 1.5, %v50
    %v52 = vmul.f32 %v47, %v51
    %vm53 = vweird.f32 %v46
    %vm54 = vweird.f32 %v47
    %vm55 = vmor %vm53, %vm54
    %v56 = vsel %vm55, %v47, %v52
    %v57 = vmul.f32 %v23, %v56
    %58 = vrot.lane.b32.xlu0 %v24, 64
    %v59 = vpop.permute.xlu0 %58
    %v61 = vsel %vm25, %v59, 0.0
    %62 = vadd.xlane.f32.xlu0 %v61
    %v63 = vpop.xlane.xlu0 %62
    %v64 = vrsqrt.pop %v63
    %v65 = vmul.f32 %v64, %v63
    %v66 = vmul.f32 %v65, %v64
    %v67 = vmul.f32 0.5, %v66
    %v68 = vsub.f32 1.5, %v67
    %v69 = vmul.f32 %v64, %v68
    %vm70 = vweird.f32 %v63
    %vm71 = vweird.f32 %v64
    %vm72 = vmor %vm70, %vm71
    %v73 = vsel %vm72, %v64, %v69
    %v74 = vmul.f32 %v23, %v73
    %75 = vrot.lane.b32.xlu0 %v24, 32
    %v76 = vpop.permute.xlu0 %75
    %v78 = vsel %vm25, %v76, 0.0
    %79 = vadd.xlane.f32.xlu0 %v78
    %v80 = vpop.xlane.xlu0 %79
    %v81 = vrsqrt.pop %v80
    %v82 = vmul.f32 %v81, %v80
    %v83 = vmul.f32 %v82, %v81
    %v84 = vmul.f32 0.5, %v83
    %v85 = vsub.f32 1.5, %v84
    %v86 = vmul.f32 %v81, %v85
    %vm87 = vweird.f32 %v80
    %vm88 = vweird.f32 %v81
    %vm89 = vmor %vm87, %vm88
    %v90 = vsel %vm89, %v81, %v86
    %v91 = vmul.f32 %v23, %v90
    %v92 = vsel %vm25, %v39, %v57
    %vm93 = vcmask 523264
    %v94 = vsel %vm93, %v92, %v74
    %vm95 = vcmask 785408
    %v96 = vsel %vm95, %v94, %v91
    %97 = vst [vmem:[#allocation5] sm:$0xff] %v96
    // Predicated region
    $region10: #{tpu_custom_call.1} parent=1 // pred_check
      _
    $region11: #{tpu_custom_call.1} parent=1 // pred_check_branch
      %99 = sbr.rel (0) target = $region13
    $region12: #{tpu_custom_call.1} parent=1 // pred_region
      %101 = vsyncadd [#allocation4], 0
      %s103 = sshll.u32 [#allocation5], 4
      %s104 = int_to_ptr.vmem [resolvable:$true] %s103
      %s105 = sshll.u32 %s1, 4
      %s106 = int_to_ptr.hbm [resolvable:$true] %s105
      %108 = dma.vmem_to_hbm [thread:$0]  %s104, 128, %s106, [#allocation4]
    $region13: #{tpu_custom_call.1} parent=1 // pred_fallthru
      _
    // Predicated region
    $region14: #{tpu_custom_call.1} parent=1 // pred_check
      _
    $region15: #{tpu_custom_call.1} parent=1 // pred_check_branch
      %110 = sbr.rel (0) target = $region17
    $region16: #{tpu_custom_call.1} parent=1 // pred_region
      %112 = dma.done [#allocation4], 128
    $region17: #{tpu_custom_call.1} parent=1 // pred_fallthru
      _
    %113 = vsyncpa [#allocation3], 1
    %114 = vsyncpa [#allocation4], 1

</llo_original>
